<compile_context>
chip_gen: v7x
topology: tpu7x:2x2x1
jax: 0.10.0
libtpu: 0.0.40
codegen_flags: <defaults>
</compile_context>

<pallas_src>
import jax
import jax.numpy as jnp
import numpy as np
from jax.experimental import pallas as pl
from jax.experimental.pallas import tpu as pltpu

# ---- model dimensions & packed-slab offsets (PyTorch [out, in] orientation) --
IN, H, OUT = 1, 10, 1
W1_OFF = 0                 # w1[j, 0]           -> 10 values
B1_OFF = W1_OFF + H        # b1[j]              -> 10
W2_OFF = B1_OFF + H        # w2[j, k] row-major -> 100 (at W2_OFF + j*H + k)
B2_OFF = W2_OFF + H * H    # b2[j]              -> 10
W3_OFF = B2_OFF + H        # w3[0, k]           -> 10
B3_OFF = W3_OFF + H        # b3[0]              -> 1
SLAB_LEN = B3_OFF + 1      # 141 f32 scalars total

LANES = 128                # lane width (fast axis)
CHUNK_ROWS = 8             # one (8,128) f32 vreg = 1024 samples per inner chunk
MAX_CHUNKS = 8             # up to (64,128) = 32 KiB of batch per grid step


def make_mlp_kernel(block_rows):
    n_chunks = block_rows // CHUNK_ROWS

    def mlp_kernel(w_ref, x_ref, o_ref):
        # w_ref: SMEM (SLAB_LEN,) f32 -- packed [w1|b1|w2|b2|w3|b3]
        # x_ref: VMEM (block_rows, 128) f32 -- batch on sublanes x lanes
        # o_ref: VMEM (block_rows, 128) f32

        # Hoist all 141 SMEM scalar reads out of the per-chunk loop (sregs).
        w1 = [w_ref[W1_OFF + j] for j in range(H)]
        b1 = [w_ref[B1_OFF + j] for j in range(H)]
        w2 = [[w_ref[W2_OFF + j * H + k] for k in range(H)] for j in range(H)]
        b2 = [w_ref[B2_OFF + j] for j in range(H)]
        w3 = [w_ref[W3_OFF + k] for k in range(H)]
        b3 = w_ref[B3_OFF]

        # Static unrolled loop over (8,128) chunks: ~23 live vregs per chunk.
        for c in range(n_chunks):
            r0 = c * CHUNK_ROWS
            x = x_ref[r0:r0 + CHUNK_ROWS, :]

            # fc1 (1 -> 10) + ReLU: 10 scalar*vector MACs on the VPU.
            h1 = [jnp.maximum(w1[j] * x + b1[j], 0.0) for j in range(H)]

            # fc2 (10 -> 10) + ReLU: 100 scalar*vector MACs, two partial
            # accumulators per output to shorten the serial add chain.
            h2 = []
            for j in range(H):
                acc_a = h1[0] * w2[j][0]
                acc_b = h1[1] * w2[j][1]
                for k in range(2, H, 2):
                    acc_a = acc_a + h1[k] * w2[j][k]
                for k in range(3, H, 2):
                    acc_b = acc_b + h1[k] * w2[j][k]
                h2.append(jnp.maximum(acc_a + acc_b + b2[j], 0.0))

            # fc3 (10 -> 1): 10-term weighted reduce, split into two chains.
            out_a = h2[0] * w3[0]
            out_b = h2[1] * w3[1]
            for k in range(2, H, 2):
                out_a = out_a + h2[k] * w3[k]
            for k in range(3, H, 2):
                out_b = out_b + h2[k] * w3[k]
            o_ref[r0:r0 + CHUNK_ROWS, :] = (out_a + out_b + b3).astype(o_ref.dtype)

    return mlp_kernel


def pack_params(p):
    """Flatten all weights/biases (PyTorch [out,in] orientation) into one f32 slab."""
    return jnp.concatenate([
        p["w1"].reshape(-1), p["b1"].reshape(-1),
        p["w2"].reshape(-1), p["b2"].reshape(-1),
        p["w3"].reshape(-1), p["b3"].reshape(-1),
    ]).astype(jnp.float32)


def nonlinear_model_forward(x, params):
    """x: (N, 1) float32; params: PyTorch-shaped dict (w1:(10,1), b1:(10,), ...)."""
    n = x.shape[0]

    # Pad the batch to a multiple of one (8,128) chunk (1024 samples).
    samples_per_chunk = CHUNK_ROWS * LANES
    n_chunks_total = pl.cdiv(n, samples_per_chunk)
    n_pad = n_chunks_total * samples_per_chunk
    n_rows = n_pad // LANES

    # Block = as many chunks as possible (<= MAX_CHUNKS) that evenly divide
    # the total chunk count, so no padding beyond chunk alignment is DMA'd.
    chunks_per_block = min(MAX_CHUNKS, n_chunks_total)
    while n_chunks_total % chunks_per_block:
        chunks_per_block -= 1
    block_rows = chunks_per_block * CHUNK_ROWS
    grid_steps = n_rows // block_rows

    # Single pad + free reshape; batch maps to sublanes x lanes.
    x_flat = x[:, 0].astype(jnp.float32)
    x_tiles = jnp.pad(x_flat, (0, n_pad - n)).reshape(n_rows, LANES)
    w_slab = pack_params(params)

    flops = (2 * (IN * H + H * H + H * OUT) + 2 * H + 1) * n_pad
    bytes_accessed = 4 * (2 * n_pad + SLAB_LEN)

    out = pl.pallas_call(
        make_mlp_kernel(block_rows),
        out_shape=jax.ShapeDtypeStruct((n_rows, LANES), jnp.float32),
        grid=(grid_steps,),
        in_specs=[
            pl.BlockSpec(memory_space=pltpu.MemorySpace.SMEM),     # packed weight slab
            pl.BlockSpec((block_rows, LANES), lambda i: (i, 0)),   # x, sublane+lane dense
        ],
        out_specs=pl.BlockSpec((block_rows, LANES), lambda i: (i, 0)),
        compiler_params=pltpu.CompilerParams(
            dimension_semantics=("parallel",)),                    # 2-TC scaling on v7x
        cost_estimate=pl.CostEstimate(
            flops=flops, transcendentals=0, bytes_accessed=bytes_accessed),
    )(w_slab, x_tiles)

    return out.reshape(-1)[:n].reshape(n, 1)


def init_params(key):
    """Deterministic init mimicking nn.Linear default U[-1/sqrt(fan_in), +1/sqrt(fan_in)]."""
    shapes = {"w1": (H, IN), "b1": (H,), "w2": (H, H), "b2": (H,),
              "w3": (OUT, H), "b3": (OUT,)}
    fan_in = {"w1": IN, "b1": IN, "w2": H, "b2": H, "w3": H, "b3": H}
    params = {}
    for name, shape in shapes.items():
        key, sub = jax.random.split(key)
        bound = 1.0 / np.sqrt(fan_in[name])
        params[name] = jax.random.uniform(sub, shape, jnp.float32,
                                          minval=-bound, maxval=bound)
    return params


def reference_forward(x, p):
    h1 = jnp.maximum(x @ p["w1"].T + p["b1"], 0.0)
    h2 = jnp.maximum(h1 @ p["w2"].T + p["b2"], 0.0)
    return h2 @ p["w3"].T + p["b3"]


if __name__ == "__main__":
    key = jax.random.PRNGKey(0)
    params = init_params(key)

    # Same input as the reference script: x = torch.linspace(1, 10, n).unsqueeze(1)
    n = 100
    x = jnp.linspace(1.0, 10.0, n, dtype=jnp.float32).reshape(n, 1)

    out = jax.block_until_ready(nonlinear_model_forward(x, params))
    ref = jax.block_until_ready(reference_forward(x, params))

    assert out.shape == (n, 1), out.shape
    np.testing.assert_allclose(np.asarray(out), np.asarray(ref),
                               rtol=1e-5, atol=1e-5)

    # Also exercise a multi-grid-step batch (several (64,128) blocks).
    n_big = 5000
    x_big = jnp.linspace(1.0, 10.0, n_big, dtype=jnp.float32).reshape(n_big, 1)
    out_big = jax.block_until_ready(nonlinear_model_forward(x_big, params))
    ref_big = jax.block_until_ready(reference_forward(x_big, params))
    np.testing.assert_allclose(np.asarray(out_big), np.asarray(ref_big),
                               rtol=1e-5, atol=1e-5)

    print("KERNEL_OK")
</pallas_src>

<mosaic_0001>
module attributes {stable_mosaic.version = 11 : i64} {
  func.func @mlp_kernel(%arg0: i32, %arg1: memref<141xf32, #tpu.memory_space<smem>>, %arg2: memref<8x128xf32, #tpu.memory_space<vmem>>, %arg3: memref<8x128xf32, #tpu.memory_space<vmem>>) attributes {dimension_semantics = [#tpu.dimension_semantics<parallel>], iteration_bounds = array<i64: 1>, scalar_prefetch = 0 : i64, scratch_operands = 0 : i64, tpu.core_type = #tpu.core_type<tc>, window_params = [{transform_indices = @transform_0, window_bounds = array<i64: 141>}, {transform_indices = @transform_1, window_bounds = array<i64: 8, 128>}, {transform_indices = @transform_2, window_bounds = array<i64: 8, 128>}]} {
    %c0 = arith.constant 0 : index
    %0 = memref.load %arg1[%c0] : memref<141xf32, #tpu.memory_space<smem>>
    %c1 = arith.constant 1 : index
    %1 = memref.load %arg1[%c1] : memref<141xf32, #tpu.memory_space<smem>>
    %c2 = arith.constant 2 : index
    %2 = memref.load %arg1[%c2] : memref<141xf32, #tpu.memory_space<smem>>
    %c3 = arith.constant 3 : index
    %3 = memref.load %arg1[%c3] : memref<141xf32, #tpu.memory_space<smem>>
    %c4 = arith.constant 4 : index
    %4 = memref.load %arg1[%c4] : memref<141xf32, #tpu.memory_space<smem>>
    %c5 = arith.constant 5 : index
    %5 = memref.load %arg1[%c5] : memref<141xf32, #tpu.memory_space<smem>>
    %c6 = arith.constant 6 : index
    %6 = memref.load %arg1[%c6] : memref<141xf32, #tpu.memory_space<smem>>
    %c7 = arith.constant 7 : index
    %7 = memref.load %arg1[%c7] : memref<141xf32, #tpu.memory_space<smem>>
    %c8 = arith.constant 8 : index
    %8 = memref.load %arg1[%c8] : memref<141xf32, #tpu.memory_space<smem>>
    %c9 = arith.constant 9 : index
    %9 = memref.load %arg1[%c9] : memref<141xf32, #tpu.memory_space<smem>>
    %c10 = arith.constant 10 : index
    %10 = memref.load %arg1[%c10] : memref<141xf32, #tpu.memory_space<smem>>
    %c11 = arith.constant 11 : index
    %11 = memref.load %arg1[%c11] : memref<141xf32, #tpu.memory_space<smem>>
    %c12 = arith.constant 12 : index
    %12 = memref.load %arg1[%c12] : memref<141xf32, #tpu.memory_space<smem>>
    %c13 = arith.constant 13 : index
    %13 = memref.load %arg1[%c13] : memref<141xf32, #tpu.memory_space<smem>>
    %c14 = arith.constant 14 : index
    %14 = memref.load %arg1[%c14] : memref<141xf32, #tpu.memory_space<smem>>
    %c15 = arith.constant 15 : index
    %15 = memref.load %arg1[%c15] : memref<141xf32, #tpu.memory_space<smem>>
    %c16 = arith.constant 16 : index
    %16 = memref.load %arg1[%c16] : memref<141xf32, #tpu.memory_space<smem>>
    %c17 = arith.constant 17 : index
    %17 = memref.load %arg1[%c17] : memref<141xf32, #tpu.memory_space<smem>>
    %c18 = arith.constant 18 : index
    %18 = memref.load %arg1[%c18] : memref<141xf32, #tpu.memory_space<smem>>
    %c19 = arith.constant 19 : index
    %19 = memref.load %arg1[%c19] : memref<141xf32, #tpu.memory_space<smem>>
    %c20 = arith.constant 20 : index
    %20 = memref.load %arg1[%c20] : memref<141xf32, #tpu.memory_space<smem>>
    %c21 = arith.constant 21 : index
    %21 = memref.load %arg1[%c21] : memref<141xf32, #tpu.memory_space<smem>>
    %c22 = arith.constant 22 : index
    %22 = memref.load %arg1[%c22] : memref<141xf32, #tpu.memory_space<smem>>
    %c23 = arith.constant 23 : index
    %23 = memref.load %arg1[%c23] : memref<141xf32, #tpu.memory_space<smem>>
    %c24 = arith.constant 24 : index
    %24 = memref.load %arg1[%c24] : memref<141xf32, #tpu.memory_space<smem>>
    %c25 = arith.constant 25 : index
    %25 = memref.load %arg1[%c25] : memref<141xf32, #tpu.memory_space<smem>>
    %c26 = arith.constant 26 : index
    %26 = memref.load %arg1[%c26] : memref<141xf32, #tpu.memory_space<smem>>
    %c27 = arith.constant 27 : index
    %27 = memref.load %arg1[%c27] : memref<141xf32, #tpu.memory_space<smem>>
    %c28 = arith.constant 28 : index
    %28 = memref.load %arg1[%c28] : memref<141xf32, #tpu.memory_space<smem>>
    %c29 = arith.constant 29 : index
    %29 = memref.load %arg1[%c29] : memref<141xf32, #tpu.memory_space<smem>>
    %c30 = arith.constant 30 : index
    %30 = memref.load %arg1[%c30] : memref<141xf32, #tpu.memory_space<smem>>
    %c31 = arith.constant 31 : index
    %31 = memref.load %arg1[%c31] : memref<141xf32, #tpu.memory_space<smem>>
    %c32 = arith.constant 32 : index
    %32 = memref.load %arg1[%c32] : memref<141xf32, #tpu.memory_space<smem>>
    %c33 = arith.constant 33 : index
    %33 = memref.load %arg1[%c33] : memref<141xf32, #tpu.memory_space<smem>>
    %c34 = arith.constant 34 : index
    %34 = memref.load %arg1[%c34] : memref<141xf32, #tpu.memory_space<smem>>
    %c35 = arith.constant 35 : index
    %35 = memref.load %arg1[%c35] : memref<141xf32, #tpu.memory_space<smem>>
    %c36 = arith.constant 36 : index
    %36 = memref.load %arg1[%c36] : memref<141xf32, #tpu.memory_space<smem>>
    %c37 = arith.constant 37 : index
    %37 = memref.load %arg1[%c37] : memref<141xf32, #tpu.memory_space<smem>>
    %c38 = arith.constant 38 : index
    %38 = memref.load %arg1[%c38] : memref<141xf32, #tpu.memory_space<smem>>
    %c39 = arith.constant 39 : index
    %39 = memref.load %arg1[%c39] : memref<141xf32, #tpu.memory_space<smem>>
    %c40 = arith.constant 40 : index
    %40 = memref.load %arg1[%c40] : memref<141xf32, #tpu.memory_space<smem>>
    %c41 = arith.constant 41 : index
    %41 = memref.load %arg1[%c41] : memref<141xf32, #tpu.memory_space<smem>>
    %c42 = arith.constant 42 : index
    %42 = memref.load %arg1[%c42] : memref<141xf32, #tpu.memory_space<smem>>
    %c43 = arith.constant 43 : index
    %43 = memref.load %arg1[%c43] : memref<141xf32, #tpu.memory_space<smem>>
    %c44 = arith.constant 44 : index
    %44 = memref.load %arg1[%c44] : memref<141xf32, #tpu.memory_space<smem>>
    %c45 = arith.constant 45 : index
    %45 = memref.load %arg1[%c45] : memref<141xf32, #tpu.memory_space<smem>>
    %c46 = arith.constant 46 : index
    %46 = memref.load %arg1[%c46] : memref<141xf32, #tpu.memory_space<smem>>
    %c47 = arith.constant 47 : index
    %47 = memref.load %arg1[%c47] : memref<141xf32, #tpu.memory_space<smem>>
    %c48 = arith.constant 48 : index
    %48 = memref.load %arg1[%c48] : memref<141xf32, #tpu.memory_space<smem>>
    %c49 = arith.constant 49 : index
    %49 = memref.load %arg1[%c49] : memref<141xf32, #tpu.memory_space<smem>>
    %c50 = arith.constant 50 : index
    %50 = memref.load %arg1[%c50] : memref<141xf32, #tpu.memory_space<smem>>
    %c51 = arith.constant 51 : index
    %51 = memref.load %arg1[%c51] : memref<141xf32, #tpu.memory_space<smem>>
    %c52 = arith.constant 52 : index
    %52 = memref.load %arg1[%c52] : memref<141xf32, #tpu.memory_space<smem>>
    %c53 = arith.constant 53 : index
    %53 = memref.load %arg1[%c53] : memref<141xf32, #tpu.memory_space<smem>>
    %c54 = arith.constant 54 : index
    %54 = memref.load %arg1[%c54] : memref<141xf32, #tpu.memory_space<smem>>
    %c55 = arith.constant 55 : index
    %55 = memref.load %arg1[%c55] : memref<141xf32, #tpu.memory_space<smem>>
    %c56 = arith.constant 56 : index
    %56 = memref.load %arg1[%c56] : memref<141xf32, #tpu.memory_space<smem>>
    %c57 = arith.constant 57 : index
    %57 = memref.load %arg1[%c57] : memref<141xf32, #tpu.memory_space<smem>>
    %c58 = arith.constant 58 : index
    %58 = memref.load %arg1[%c58] : memref<141xf32, #tpu.memory_space<smem>>
    %c59 = arith.constant 59 : index
    %59 = memref.load %arg1[%c59] : memref<141xf32, #tpu.memory_space<smem>>
    %c60 = arith.constant 60 : index
    %60 = memref.load %arg1[%c60] : memref<141xf32, #tpu.memory_space<smem>>
    %c61 = arith.constant 61 : index
    %61 = memref.load %arg1[%c61] : memref<141xf32, #tpu.memory_space<smem>>
    %c62 = arith.constant 62 : index
    %62 = memref.load %arg1[%c62] : memref<141xf32, #tpu.memory_space<smem>>
    %c63 = arith.constant 63 : index
    %63 = memref.load %arg1[%c63] : memref<141xf32, #tpu.memory_space<smem>>
    %c64 = arith.constant 64 : index
    %64 = memref.load %arg1[%c64] : memref<141xf32, #tpu.memory_space<smem>>
    %c65 = arith.constant 65 : index
    %65 = memref.load %arg1[%c65] : memref<141xf32, #tpu.memory_space<smem>>
    %c66 = arith.constant 66 : index
    %66 = memref.load %arg1[%c66] : memref<141xf32, #tpu.memory_space<smem>>
    %c67 = arith.constant 67 : index
    %67 = memref.load %arg1[%c67] : memref<141xf32, #tpu.memory_space<smem>>
    %c68 = arith.constant 68 : index
    %68 = memref.load %arg1[%c68] : memref<141xf32, #tpu.memory_space<smem>>
    %c69 = arith.constant 69 : index
    %69 = memref.load %arg1[%c69] : memref<141xf32, #tpu.memory_space<smem>>
    %c70 = arith.constant 70 : index
    %70 = memref.load %arg1[%c70] : memref<141xf32, #tpu.memory_space<smem>>
    %c71 = arith.constant 71 : index
    %71 = memref.load %arg1[%c71] : memref<141xf32, #tpu.memory_space<smem>>
    %c72 = arith.constant 72 : index
    %72 = memref.load %arg1[%c72] : memref<141xf32, #tpu.memory_space<smem>>
    %c73 = arith.constant 73 : index
    %73 = memref.load %arg1[%c73] : memref<141xf32, #tpu.memory_space<smem>>
    %c74 = arith.constant 74 : index
    %74 = memref.load %arg1[%c74] : memref<141xf32, #tpu.memory_space<smem>>
    %c75 = arith.constant 75 : index
    %75 = memref.load %arg1[%c75] : memref<141xf32, #tpu.memory_space<smem>>
    %c76 = arith.constant 76 : index
    %76 = memref.load %arg1[%c76] : memref<141xf32, #tpu.memory_space<smem>>
    %c77 = arith.constant 77 : index
    %77 = memref.load %arg1[%c77] : memref<141xf32, #tpu.memory_space<smem>>
    %c78 = arith.constant 78 : index
    %78 = memref.load %arg1[%c78] : memref<141xf32, #tpu.memory_space<smem>>
    %c79 = arith.constant 79 : index
    %79 = memref.load %arg1[%c79] : memref<141xf32, #tpu.memory_space<smem>>
    %c80 = arith.constant 80 : index
    %80 = memref.load %arg1[%c80] : memref<141xf32, #tpu.memory_space<smem>>
    %c81 = arith.constant 81 : index
    %81 = memref.load %arg1[%c81] : memref<141xf32, #tpu.memory_space<smem>>
    %c82 = arith.constant 82 : index
    %82 = memref.load %arg1[%c82] : memref<141xf32, #tpu.memory_space<smem>>
    %c83 = arith.constant 83 : index
    %83 = memref.load %arg1[%c83] : memref<141xf32, #tpu.memory_space<smem>>
    %c84 = arith.constant 84 : index
    %84 = memref.load %arg1[%c84] : memref<141xf32, #tpu.memory_space<smem>>
    %c85 = arith.constant 85 : index
    %85 = memref.load %arg1[%c85] : memref<141xf32, #tpu.memory_space<smem>>
    %c86 = arith.constant 86 : index
    %86 = memref.load %arg1[%c86] : memref<141xf32, #tpu.memory_space<smem>>
    %c87 = arith.constant 87 : index
    %87 = memref.load %arg1[%c87] : memref<141xf32, #tpu.memory_space<smem>>
    %c88 = arith.constant 88 : index
    %88 = memref.load %arg1[%c88] : memref<141xf32, #tpu.memory_space<smem>>
    %c89 = arith.constant 89 : index
    %89 = memref.load %arg1[%c89] : memref<141xf32, #tpu.memory_space<smem>>
    %c90 = arith.constant 90 : index
    %90 = memref.load %arg1[%c90] : memref<141xf32, #tpu.memory_space<smem>>
    %c91 = arith.constant 91 : index
    %91 = memref.load %arg1[%c91] : memref<141xf32, #tpu.memory_space<smem>>
    %c92 = arith.constant 92 : index
    %92 = memref.load %arg1[%c92] : memref<141xf32, #tpu.memory_space<smem>>
    %c93 = arith.constant 93 : index
    %93 = memref.load %arg1[%c93] : memref<141xf32, #tpu.memory_space<smem>>
    %c94 = arith.constant 94 : index
    %94 = memref.load %arg1[%c94] : memref<141xf32, #tpu.memory_space<smem>>
    %c95 = arith.constant 95 : index
    %95 = memref.load %arg1[%c95] : memref<141xf32, #tpu.memory_space<smem>>
    %c96 = arith.constant 96 : index
    %96 = memref.load %arg1[%c96] : memref<141xf32, #tpu.memory_space<smem>>
    %c97 = arith.constant 97 : index
    %97 = memref.load %arg1[%c97] : memref<141xf32, #tpu.memory_space<smem>>
    %c98 = arith.constant 98 : index
    %98 = memref.load %arg1[%c98] : memref<141xf32, #tpu.memory_space<smem>>
    %c99 = arith.constant 99 : index
    %99 = memref.load %arg1[%c99] : memref<141xf32, #tpu.memory_space<smem>>
    %c100 = arith.constant 100 : index
    %100 = memref.load %arg1[%c100] : memref<141xf32, #tpu.memory_space<smem>>
    %c101 = arith.constant 101 : index
    %101 = memref.load %arg1[%c101] : memref<141xf32, #tpu.memory_space<smem>>
    %c102 = arith.constant 102 : index
    %102 = memref.load %arg1[%c102] : memref<141xf32, #tpu.memory_space<smem>>
    %c103 = arith.constant 103 : index
    %103 = memref.load %arg1[%c103] : memref<141xf32, #tpu.memory_space<smem>>
    %c104 = arith.constant 104 : index
    %104 = memref.load %arg1[%c104] : memref<141xf32, #tpu.memory_space<smem>>
    %c105 = arith.constant 105 : index
    %105 = memref.load %arg1[%c105] : memref<141xf32, #tpu.memory_space<smem>>
    %c106 = arith.constant 106 : index
    %106 = memref.load %arg1[%c106] : memref<141xf32, #tpu.memory_space<smem>>
    %c107 = arith.constant 107 : index
    %107 = memref.load %arg1[%c107] : memref<141xf32, #tpu.memory_space<smem>>
    %c108 = arith.constant 108 : index
    %108 = memref.load %arg1[%c108] : memref<141xf32, #tpu.memory_space<smem>>
    %c109 = arith.constant 109 : index
    %109 = memref.load %arg1[%c109] : memref<141xf32, #tpu.memory_space<smem>>
    %c110 = arith.constant 110 : index
    %110 = memref.load %arg1[%c110] : memref<141xf32, #tpu.memory_space<smem>>
    %c111 = arith.constant 111 : index
    %111 = memref.load %arg1[%c111] : memref<141xf32, #tpu.memory_space<smem>>
    %c112 = arith.constant 112 : index
    %112 = memref.load %arg1[%c112] : memref<141xf32, #tpu.memory_space<smem>>
    %c113 = arith.constant 113 : index
    %113 = memref.load %arg1[%c113] : memref<141xf32, #tpu.memory_space<smem>>
    %c114 = arith.constant 114 : index
    %114 = memref.load %arg1[%c114] : memref<141xf32, #tpu.memory_space<smem>>
    %c115 = arith.constant 115 : index
    %115 = memref.load %arg1[%c115] : memref<141xf32, #tpu.memory_space<smem>>
    %c116 = arith.constant 116 : index
    %116 = memref.load %arg1[%c116] : memref<141xf32, #tpu.memory_space<smem>>
    %c117 = arith.constant 117 : index
    %117 = memref.load %arg1[%c117] : memref<141xf32, #tpu.memory_space<smem>>
    %c118 = arith.constant 118 : index
    %118 = memref.load %arg1[%c118] : memref<141xf32, #tpu.memory_space<smem>>
    %c119 = arith.constant 119 : index
    %119 = memref.load %arg1[%c119] : memref<141xf32, #tpu.memory_space<smem>>
    %c120 = arith.constant 120 : index
    %120 = memref.load %arg1[%c120] : memref<141xf32, #tpu.memory_space<smem>>
    %c121 = arith.constant 121 : index
    %121 = memref.load %arg1[%c121] : memref<141xf32, #tpu.memory_space<smem>>
    %c122 = arith.constant 122 : index
    %122 = memref.load %arg1[%c122] : memref<141xf32, #tpu.memory_space<smem>>
    %c123 = arith.constant 123 : index
    %123 = memref.load %arg1[%c123] : memref<141xf32, #tpu.memory_space<smem>>
    %c124 = arith.constant 124 : index
    %124 = memref.load %arg1[%c124] : memref<141xf32, #tpu.memory_space<smem>>
    %c125 = arith.constant 125 : index
    %125 = memref.load %arg1[%c125] : memref<141xf32, #tpu.memory_space<smem>>
    %c126 = arith.constant 126 : index
    %126 = memref.load %arg1[%c126] : memref<141xf32, #tpu.memory_space<smem>>
    %c127 = arith.constant 127 : index
    %127 = memref.load %arg1[%c127] : memref<141xf32, #tpu.memory_space<smem>>
    %c128 = arith.constant 128 : index
    %128 = memref.load %arg1[%c128] : memref<141xf32, #tpu.memory_space<smem>>
    %c129 = arith.constant 129 : index
    %129 = memref.load %arg1[%c129] : memref<141xf32, #tpu.memory_space<smem>>
    %c130 = arith.constant 130 : index
    %130 = memref.load %arg1[%c130] : memref<141xf32, #tpu.memory_space<smem>>
    %c131 = arith.constant 131 : index
    %131 = memref.load %arg1[%c131] : memref<141xf32, #tpu.memory_space<smem>>
    %c132 = arith.constant 132 : index
    %132 = memref.load %arg1[%c132] : memref<141xf32, #tpu.memory_space<smem>>
    %c133 = arith.constant 133 : index
    %133 = memref.load %arg1[%c133] : memref<141xf32, #tpu.memory_space<smem>>
    %c134 = arith.constant 134 : index
    %134 = memref.load %arg1[%c134] : memref<141xf32, #tpu.memory_space<smem>>
    %c135 = arith.constant 135 : index
    %135 = memref.load %arg1[%c135] : memref<141xf32, #tpu.memory_space<smem>>
    %c136 = arith.constant 136 : index
    %136 = memref.load %arg1[%c136] : memref<141xf32, #tpu.memory_space<smem>>
    %c137 = arith.constant 137 : index
    %137 = memref.load %arg1[%c137] : memref<141xf32, #tpu.memory_space<smem>>
    %c138 = arith.constant 138 : index
    %138 = memref.load %arg1[%c138] : memref<141xf32, #tpu.memory_space<smem>>
    %c139 = arith.constant 139 : index
    %139 = memref.load %arg1[%c139] : memref<141xf32, #tpu.memory_space<smem>>
    %c140 = arith.constant 140 : index
    %140 = memref.load %arg1[%c140] : memref<141xf32, #tpu.memory_space<smem>>
    %c0_0 = arith.constant 0 : index
    %c0_1 = arith.constant 0 : index
    %141 = vector.load %arg2[%c0_0, %c0_1] : memref<8x128xf32, #tpu.memory_space<vmem>>, vector<8x128xf32>
    %142 = vector.broadcast %0 : f32 to vector<8x128xf32>
    %143 = arith.mulf %142, %141 : vector<8x128xf32>
    %144 = vector.broadcast %10 : f32 to vector<8x128xf32>
    %145 = arith.addf %143, %144 : vector<8x128xf32>
    %cst = arith.constant 0.000000e+00 : f32
    %146 = vector.broadcast %cst : f32 to vector<8x128xf32>
    %147 = arith.maximumf %145, %146 : vector<8x128xf32>
    %148 = vector.broadcast %1 : f32 to vector<8x128xf32>
    %149 = arith.mulf %148, %141 : vector<8x128xf32>
    %150 = vector.broadcast %11 : f32 to vector<8x128xf32>
    %151 = arith.addf %149, %150 : vector<8x128xf32>
    %cst_2 = arith.constant 0.000000e+00 : f32
    %152 = vector.broadcast %cst_2 : f32 to vector<8x128xf32>
    %153 = arith.maximumf %151, %152 : vector<8x128xf32>
    %154 = vector.broadcast %2 : f32 to vector<8x128xf32>
    %155 = arith.mulf %154, %141 : vector<8x128xf32>
    %156 = vector.broadcast %12 : f32 to vector<8x128xf32>
    %157 = arith.addf %155, %156 : vector<8x128xf32>
    %cst_3 = arith.constant 0.000000e+00 : f32
    %158 = vector.broadcast %cst_3 : f32 to vector<8x128xf32>
    %159 = arith.maximumf %157, %158 : vector<8x128xf32>
    %160 = vector.broadcast %3 : f32 to vector<8x128xf32>
    %161 = arith.mulf %160, %141 : vector<8x128xf32>
    %162 = vector.broadcast %13 : f32 to vector<8x128xf32>
    %163 = arith.addf %161, %162 : vector<8x128xf32>
    %cst_4 = arith.constant 0.000000e+00 : f32
    %164 = vector.broadcast %cst_4 : f32 to vector<8x128xf32>
    %165 = arith.maximumf %163, %164 : vector<8x128xf32>
    %166 = vector.broadcast %4 : f32 to vector<8x128xf32>
    %167 = arith.mulf %166, %141 : vector<8x128xf32>
    %168 = vector.broadcast %14 : f32 to vector<8x128xf32>
    %169 = arith.addf %167, %168 : vector<8x128xf32>
    %cst_5 = arith.constant 0.000000e+00 : f32
    %170 = vector.broadcast %cst_5 : f32 to vector<8x128xf32>
    %171 = arith.maximumf %169, %170 : vector<8x128xf32>
    %172 = vector.broadcast %5 : f32 to vector<8x128xf32>
    %173 = arith.mulf %172, %141 : vector<8x128xf32>
    %174 = vector.broadcast %15 : f32 to vector<8x128xf32>
    %175 = arith.addf %173, %174 : vector<8x128xf32>
    %cst_6 = arith.constant 0.000000e+00 : f32
    %176 = vector.broadcast %cst_6 : f32 to vector<8x128xf32>
    %177 = arith.maximumf %175, %176 : vector<8x128xf32>
    %178 = vector.broadcast %6 : f32 to vector<8x128xf32>
    %179 = arith.mulf %178, %141 : vector<8x128xf32>
    %180 = vector.broadcast %16 : f32 to vector<8x128xf32>
    %181 = arith.addf %179, %180 : vector<8x128xf32>
    %cst_7 = arith.constant 0.000000e+00 : f32
    %182 = vector.broadcast %cst_7 : f32 to vector<8x128xf32>
    %183 = arith.maximumf %181, %182 : vector<8x128xf32>
    %184 = vector.broadcast %7 : f32 to vector<8x128xf32>
    %185 = arith.mulf %184, %141 : vector<8x128xf32>
    %186 = vector.broadcast %17 : f32 to vector<8x128xf32>
    %187 = arith.addf %185, %186 : vector<8x128xf32>
    %cst_8 = arith.constant 0.000000e+00 : f32
    %188 = vector.broadcast %cst_8 : f32 to vector<8x128xf32>
    %189 = arith.maximumf %187, %188 : vector<8x128xf32>
    %190 = vector.broadcast %8 : f32 to vector<8x128xf32>
    %191 = arith.mulf %190, %141 : vector<8x128xf32>
    %192 = vector.broadcast %18 : f32 to vector<8x128xf32>
    %193 = arith.addf %191, %192 : vector<8x128xf32>
    %cst_9 = arith.constant 0.000000e+00 : f32
    %194 = vector.broadcast %cst_9 : f32 to vector<8x128xf32>
    %195 = arith.maximumf %193, %194 : vector<8x128xf32>
    %196 = vector.broadcast %9 : f32 to vector<8x128xf32>
    %197 = arith.mulf %196, %141 : vector<8x128xf32>
    %198 = vector.broadcast %19 : f32 to vector<8x128xf32>
    %199 = arith.addf %197, %198 : vector<8x128xf32>
    %cst_10 = arith.constant 0.000000e+00 : f32
    %200 = vector.broadcast %cst_10 : f32 to vector<8x128xf32>
    %201 = arith.maximumf %199, %200 : vector<8x128xf32>
    %202 = vector.broadcast %20 : f32 to vector<8x128xf32>
    %203 = arith.mulf %147, %202 : vector<8x128xf32>
    %204 = vector.broadcast %21 : f32 to vector<8x128xf32>
    %205 = arith.mulf %153, %204 : vector<8x128xf32>
    %206 = vector.broadcast %22 : f32 to vector<8x128xf32>
    %207 = arith.mulf %159, %206 : vector<8x128xf32>
    %208 = arith.addf %203, %207 : vector<8x128xf32>
    %209 = vector.broadcast %24 : f32 to vector<8x128xf32>
    %210 = arith.mulf %171, %209 : vector<8x128xf32>
    %211 = arith.addf %208, %210 : vector<8x128xf32>
    %212 = vector.broadcast %26 : f32 to vector<8x128xf32>
    %213 = arith.mulf %183, %212 : vector<8x128xf32>
    %214 = arith.addf %211, %213 : vector<8x128xf32>
    %215 = vector.broadcast %28 : f32 to vector<8x128xf32>
    %216 = arith.mulf %195, %215 : vector<8x128xf32>
    %217 = arith.addf %214, %216 : vector<8x128xf32>
    %218 = vector.broadcast %23 : f32 to vector<8x128xf32>
    %219 = arith.mulf %165, %218 : vector<8x128xf32>
    %220 = arith.addf %205, %219 : vector<8x128xf32>
    %221 = vector.broadcast %25 : f32 to vector<8x128xf32>
    %222 = arith.mulf %177, %221 : vector<8x128xf32>
    %223 = arith.addf %220, %222 : vector<8x128xf32>
    %224 = vector.broadcast %27 : f32 to vector<8x128xf32>
    %225 = arith.mulf %189, %224 : vector<8x128xf32>
    %226 = arith.addf %223, %225 : vector<8x128xf32>
    %227 = vector.broadcast %29 : f32 to vector<8x128xf32>
    %228 = arith.mulf %201, %227 : vector<8x128xf32>
    %229 = arith.addf %226, %228 : vector<8x128xf32>
    %230 = arith.addf %217, %229 : vector<8x128xf32>
    %231 = vector.broadcast %120 : f32 to vector<8x128xf32>
    %232 = arith.addf %230, %231 : vector<8x128xf32>
    %cst_11 = arith.constant 0.000000e+00 : f32
    %233 = vector.broadcast %cst_11 : f32 to vector<8x128xf32>
    %234 = arith.maximumf %232, %233 : vector<8x128xf32>
    %235 = vector.broadcast %30 : f32 to vector<8x128xf32>
    %236 = arith.mulf %147, %235 : vector<8x128xf32>
    %237 = vector.broadcast %31 : f32 to vector<8x128xf32>
    %238 = arith.mulf %153, %237 : vector<8x128xf32>
    %239 = vector.broadcast %32 : f32 to vector<8x128xf32>
    %240 = arith.mulf %159, %239 : vector<8x128xf32>
    %241 = arith.addf %236, %240 : vector<8x128xf32>
    %242 = vector.broadcast %34 : f32 to vector<8x128xf32>
    %243 = arith.mulf %171, %242 : vector<8x128xf32>
    %244 = arith.addf %241, %243 : vector<8x128xf32>
    %245 = vector.broadcast %36 : f32 to vector<8x128xf32>
    %246 = arith.mulf %183, %245 : vector<8x128xf32>
    %247 = arith.addf %244, %246 : vector<8x128xf32>
    %248 = vector.broadcast %38 : f32 to vector<8x128xf32>
    %249 = arith.mulf %195, %248 : vector<8x128xf32>
    %250 = arith.addf %247, %249 : vector<8x128xf32>
    %251 = vector.broadcast %33 : f32 to vector<8x128xf32>
    %252 = arith.mulf %165, %251 : vector<8x128xf32>
    %253 = arith.addf %238, %252 : vector<8x128xf32>
    %254 = vector.broadcast %35 : f32 to vector<8x128xf32>
    %255 = arith.mulf %177, %254 : vector<8x128xf32>
    %256 = arith.addf %253, %255 : vector<8x128xf32>
    %257 = vector.broadcast %37 : f32 to vector<8x128xf32>
    %258 = arith.mulf %189, %257 : vector<8x128xf32>
    %259 = arith.addf %256, %258 : vector<8x128xf32>
    %260 = vector.broadcast %39 : f32 to vector<8x128xf32>
    %261 = arith.mulf %201, %260 : vector<8x128xf32>
    %262 = arith.addf %259, %261 : vector<8x128xf32>
    %263 = arith.addf %250, %262 : vector<8x128xf32>
    %264 = vector.broadcast %121 : f32 to vector<8x128xf32>
    %265 = arith.addf %263, %264 : vector<8x128xf32>
    %cst_12 = arith.constant 0.000000e+00 : f32
    %266 = vector.broadcast %cst_12 : f32 to vector<8x128xf32>
    %267 = arith.maximumf %265, %266 : vector<8x128xf32>
    %268 = vector.broadcast %40 : f32 to vector<8x128xf32>
    %269 = arith.mulf %147, %268 : vector<8x128xf32>
    %270 = vector.broadcast %41 : f32 to vector<8x128xf32>
    %271 = arith.mulf %153, %270 : vector<8x128xf32>
    %272 = vector.broadcast %42 : f32 to vector<8x128xf32>
    %273 = arith.mulf %159, %272 : vector<8x128xf32>
    %274 = arith.addf %269, %273 : vector<8x128xf32>
    %275 = vector.broadcast %44 : f32 to vector<8x128xf32>
    %276 = arith.mulf %171, %275 : vector<8x128xf32>
    %277 = arith.addf %274, %276 : vector<8x128xf32>
    %278 = vector.broadcast %46 : f32 to vector<8x128xf32>
    %279 = arith.mulf %183, %278 : vector<8x128xf32>
    %280 = arith.addf %277, %279 : vector<8x128xf32>
    %281 = vector.broadcast %48 : f32 to vector<8x128xf32>
    %282 = arith.mulf %195, %281 : vector<8x128xf32>
    %283 = arith.addf %280, %282 : vector<8x128xf32>
    %284 = vector.broadcast %43 : f32 to vector<8x128xf32>
    %285 = arith.mulf %165, %284 : vector<8x128xf32>
    %286 = arith.addf %271, %285 : vector<8x128xf32>
    %287 = vector.broadcast %45 : f32 to vector<8x128xf32>
    %288 = arith.mulf %177, %287 : vector<8x128xf32>
    %289 = arith.addf %286, %288 : vector<8x128xf32>
    %290 = vector.broadcast %47 : f32 to vector<8x128xf32>
    %291 = arith.mulf %189, %290 : vector<8x128xf32>
    %292 = arith.addf %289, %291 : vector<8x128xf32>
    %293 = vector.broadcast %49 : f32 to vector<8x128xf32>
    %294 = arith.mulf %201, %293 : vector<8x128xf32>
    %295 = arith.addf %292, %294 : vector<8x128xf32>
    %296 = arith.addf %283, %295 : vector<8x128xf32>
    %297 = vector.broadcast %122 : f32 to vector<8x128xf32>
    %298 = arith.addf %296, %297 : vector<8x128xf32>
    %cst_13 = arith.constant 0.000000e+00 : f32
    %299 = vector.broadcast %cst_13 : f32 to vector<8x128xf32>
    %300 = arith.maximumf %298, %299 : vector<8x128xf32>
    %301 = vector.broadcast %50 : f32 to vector<8x128xf32>
    %302 = arith.mulf %147, %301 : vector<8x128xf32>
    %303 = vector.broadcast %51 : f32 to vector<8x128xf32>
    %304 = arith.mulf %153, %303 : vector<8x128xf32>
    %305 = vector.broadcast %52 : f32 to vector<8x128xf32>
    %306 = arith.mulf %159, %305 : vector<8x128xf32>
    %307 = arith.addf %302, %306 : vector<8x128xf32>
    %308 = vector.broadcast %54 : f32 to vector<8x128xf32>
    %309 = arith.mulf %171, %308 : vector<8x128xf32>
    %310 = arith.addf %307, %309 : vector<8x128xf32>
    %311 = vector.broadcast %56 : f32 to vector<8x128xf32>
    %312 = arith.mulf %183, %311 : vector<8x128xf32>
    %313 = arith.addf %310, %312 : vector<8x128xf32>
    %314 = vector.broadcast %58 : f32 to vector<8x128xf32>
    %315 = arith.mulf %195, %314 : vector<8x128xf32>
    %316 = arith.addf %313, %315 : vector<8x128xf32>
    %317 = vector.broadcast %53 : f32 to vector<8x128xf32>
    %318 = arith.mulf %165, %317 : vector<8x128xf32>
    %319 = arith.addf %304, %318 : vector<8x128xf32>
    %320 = vector.broadcast %55 : f32 to vector<8x128xf32>
    %321 = arith.mulf %177, %320 : vector<8x128xf32>
    %322 = arith.addf %319, %321 : vector<8x128xf32>
    %323 = vector.broadcast %57 : f32 to vector<8x128xf32>
    %324 = arith.mulf %189, %323 : vector<8x128xf32>
    %325 = arith.addf %322, %324 : vector<8x128xf32>
    %326 = vector.broadcast %59 : f32 to vector<8x128xf32>
    %327 = arith.mulf %201, %326 : vector<8x128xf32>
    %328 = arith.addf %325, %327 : vector<8x128xf32>
    %329 = arith.addf %316, %328 : vector<8x128xf32>
    %330 = vector.broadcast %123 : f32 to vector<8x128xf32>
    %331 = arith.addf %329, %330 : vector<8x128xf32>
    %cst_14 = arith.constant 0.000000e+00 : f32
    %332 = vector.broadcast %cst_14 : f32 to vector<8x128xf32>
    %333 = arith.maximumf %331, %332 : vector<8x128xf32>
    %334 = vector.broadcast %60 : f32 to vector<8x128xf32>
    %335 = arith.mulf %147, %334 : vector<8x128xf32>
    %336 = vector.broadcast %61 : f32 to vector<8x128xf32>
    %337 = arith.mulf %153, %336 : vector<8x128xf32>
    %338 = vector.broadcast %62 : f32 to vector<8x128xf32>
    %339 = arith.mulf %159, %338 : vector<8x128xf32>
    %340 = arith.addf %335, %339 : vector<8x128xf32>
    %341 = vector.broadcast %64 : f32 to vector<8x128xf32>
    %342 = arith.mulf %171, %341 : vector<8x128xf32>
    %343 = arith.addf %340, %342 : vector<8x128xf32>
    %344 = vector.broadcast %66 : f32 to vector<8x128xf32>
    %345 = arith.mulf %183, %344 : vector<8x128xf32>
    %346 = arith.addf %343, %345 : vector<8x128xf32>
    %347 = vector.broadcast %68 : f32 to vector<8x128xf32>
    %348 = arith.mulf %195, %347 : vector<8x128xf32>
    %349 = arith.addf %346, %348 : vector<8x128xf32>
    %350 = vector.broadcast %63 : f32 to vector<8x128xf32>
    %351 = arith.mulf %165, %350 : vector<8x128xf32>
    %352 = arith.addf %337, %351 : vector<8x128xf32>
    %353 = vector.broadcast %65 : f32 to vector<8x128xf32>
    %354 = arith.mulf %177, %353 : vector<8x128xf32>
    %355 = arith.addf %352, %354 : vector<8x128xf32>
    %356 = vector.broadcast %67 : f32 to vector<8x128xf32>
    %357 = arith.mulf %189, %356 : vector<8x128xf32>
    %358 = arith.addf %355, %357 : vector<8x128xf32>
    %359 = vector.broadcast %69 : f32 to vector<8x128xf32>
    %360 = arith.mulf %201, %359 : vector<8x128xf32>
    %361 = arith.addf %358, %360 : vector<8x128xf32>
    %362 = arith.addf %349, %361 : vector<8x128xf32>
    %363 = vector.broadcast %124 : f32 to vector<8x128xf32>
    %364 = arith.addf %362, %363 : vector<8x128xf32>
    %cst_15 = arith.constant 0.000000e+00 : f32
    %365 = vector.broadcast %cst_15 : f32 to vector<8x128xf32>
    %366 = arith.maximumf %364, %365 : vector<8x128xf32>
    %367 = vector.broadcast %70 : f32 to vector<8x128xf32>
    %368 = arith.mulf %147, %367 : vector<8x128xf32>
    %369 = vector.broadcast %71 : f32 to vector<8x128xf32>
    %370 = arith.mulf %153, %369 : vector<8x128xf32>
    %371 = vector.broadcast %72 : f32 to vector<8x128xf32>
    %372 = arith.mulf %159, %371 : vector<8x128xf32>
    %373 = arith.addf %368, %372 : vector<8x128xf32>
    %374 = vector.broadcast %74 : f32 to vector<8x128xf32>
    %375 = arith.mulf %171, %374 : vector<8x128xf32>
    %376 = arith.addf %373, %375 : vector<8x128xf32>
    %377 = vector.broadcast %76 : f32 to vector<8x128xf32>
    %378 = arith.mulf %183, %377 : vector<8x128xf32>
    %379 = arith.addf %376, %378 : vector<8x128xf32>
    %380 = vector.broadcast %78 : f32 to vector<8x128xf32>
    %381 = arith.mulf %195, %380 : vector<8x128xf32>
    %382 = arith.addf %379, %381 : vector<8x128xf32>
    %383 = vector.broadcast %73 : f32 to vector<8x128xf32>
    %384 = arith.mulf %165, %383 : vector<8x128xf32>
    %385 = arith.addf %370, %384 : vector<8x128xf32>
    %386 = vector.broadcast %75 : f32 to vector<8x128xf32>
    %387 = arith.mulf %177, %386 : vector<8x128xf32>
    %388 = arith.addf %385, %387 : vector<8x128xf32>
    %389 = vector.broadcast %77 : f32 to vector<8x128xf32>
    %390 = arith.mulf %189, %389 : vector<8x128xf32>
    %391 = arith.addf %388, %390 : vector<8x128xf32>
    %392 = vector.broadcast %79 : f32 to vector<8x128xf32>
    %393 = arith.mulf %201, %392 : vector<8x128xf32>
    %394 = arith.addf %391, %393 : vector<8x128xf32>
    %395 = arith.addf %382, %394 : vector<8x128xf32>
    %396 = vector.broadcast %125 : f32 to vector<8x128xf32>
    %397 = arith.addf %395, %396 : vector<8x128xf32>
    %cst_16 = arith.constant 0.000000e+00 : f32
    %398 = vector.broadcast %cst_16 : f32 to vector<8x128xf32>
    %399 = arith.maximumf %397, %398 : vector<8x128xf32>
    %400 = vector.broadcast %80 : f32 to vector<8x128xf32>
    %401 = arith.mulf %147, %400 : vector<8x128xf32>
    %402 = vector.broadcast %81 : f32 to vector<8x128xf32>
    %403 = arith.mulf %153, %402 : vector<8x128xf32>
    %404 = vector.broadcast %82 : f32 to vector<8x128xf32>
    %405 = arith.mulf %159, %404 : vector<8x128xf32>
    %406 = arith.addf %401, %405 : vector<8x128xf32>
    %407 = vector.broadcast %84 : f32 to vector<8x128xf32>
    %408 = arith.mulf %171, %407 : vector<8x128xf32>
    %409 = arith.addf %406, %408 : vector<8x128xf32>
    %410 = vector.broadcast %86 : f32 to vector<8x128xf32>
    %411 = arith.mulf %183, %410 : vector<8x128xf32>
    %412 = arith.addf %409, %411 : vector<8x128xf32>
    %413 = vector.broadcast %88 : f32 to vector<8x128xf32>
    %414 = arith.mulf %195, %413 : vector<8x128xf32>
    %415 = arith.addf %412, %414 : vector<8x128xf32>
    %416 = vector.broadcast %83 : f32 to vector<8x128xf32>
    %417 = arith.mulf %165, %416 : vector<8x128xf32>
    %418 = arith.addf %403, %417 : vector<8x128xf32>
    %419 = vector.broadcast %85 : f32 to vector<8x128xf32>
    %420 = arith.mulf %177, %419 : vector<8x128xf32>
    %421 = arith.addf %418, %420 : vector<8x128xf32>
    %422 = vector.broadcast %87 : f32 to vector<8x128xf32>
    %423 = arith.mulf %189, %422 : vector<8x128xf32>
    %424 = arith.addf %421, %423 : vector<8x128xf32>
    %425 = vector.broadcast %89 : f32 to vector<8x128xf32>
    %426 = arith.mulf %201, %425 : vector<8x128xf32>
    %427 = arith.addf %424, %426 : vector<8x128xf32>
    %428 = arith.addf %415, %427 : vector<8x128xf32>
    %429 = vector.broadcast %126 : f32 to vector<8x128xf32>
    %430 = arith.addf %428, %429 : vector<8x128xf32>
    %cst_17 = arith.constant 0.000000e+00 : f32
    %431 = vector.broadcast %cst_17 : f32 to vector<8x128xf32>
    %432 = arith.maximumf %430, %431 : vector<8x128xf32>
    %433 = vector.broadcast %90 : f32 to vector<8x128xf32>
    %434 = arith.mulf %147, %433 : vector<8x128xf32>
    %435 = vector.broadcast %91 : f32 to vector<8x128xf32>
    %436 = arith.mulf %153, %435 : vector<8x128xf32>
    %437 = vector.broadcast %92 : f32 to vector<8x128xf32>
    %438 = arith.mulf %159, %437 : vector<8x128xf32>
    %439 = arith.addf %434, %438 : vector<8x128xf32>
    %440 = vector.broadcast %94 : f32 to vector<8x128xf32>
    %441 = arith.mulf %171, %440 : vector<8x128xf32>
    %442 = arith.addf %439, %441 : vector<8x128xf32>
    %443 = vector.broadcast %96 : f32 to vector<8x128xf32>
    %444 = arith.mulf %183, %443 : vector<8x128xf32>
    %445 = arith.addf %442, %444 : vector<8x128xf32>
    %446 = vector.broadcast %98 : f32 to vector<8x128xf32>
    %447 = arith.mulf %195, %446 : vector<8x128xf32>
    %448 = arith.addf %445, %447 : vector<8x128xf32>
    %449 = vector.broadcast %93 : f32 to vector<8x128xf32>
    %450 = arith.mulf %165, %449 : vector<8x128xf32>
    %451 = arith.addf %436, %450 : vector<8x128xf32>
    %452 = vector.broadcast %95 : f32 to vector<8x128xf32>
    %453 = arith.mulf %177, %452 : vector<8x128xf32>
    %454 = arith.addf %451, %453 : vector<8x128xf32>
    %455 = vector.broadcast %97 : f32 to vector<8x128xf32>
    %456 = arith.mulf %189, %455 : vector<8x128xf32>
    %457 = arith.addf %454, %456 : vector<8x128xf32>
    %458 = vector.broadcast %99 : f32 to vector<8x128xf32>
    %459 = arith.mulf %201, %458 : vector<8x128xf32>
    %460 = arith.addf %457, %459 : vector<8x128xf32>
    %461 = arith.addf %448, %460 : vector<8x128xf32>
    %462 = vector.broadcast %127 : f32 to vector<8x128xf32>
    %463 = arith.addf %461, %462 : vector<8x128xf32>
    %cst_18 = arith.constant 0.000000e+00 : f32
    %464 = vector.broadcast %cst_18 : f32 to vector<8x128xf32>
    %465 = arith.maximumf %463, %464 : vector<8x128xf32>
    %466 = vector.broadcast %100 : f32 to vector<8x128xf32>
    %467 = arith.mulf %147, %466 : vector<8x128xf32>
    %468 = vector.broadcast %101 : f32 to vector<8x128xf32>
    %469 = arith.mulf %153, %468 : vector<8x128xf32>
    %470 = vector.broadcast %102 : f32 to vector<8x128xf32>
    %471 = arith.mulf %159, %470 : vector<8x128xf32>
    %472 = arith.addf %467, %471 : vector<8x128xf32>
    %473 = vector.broadcast %104 : f32 to vector<8x128xf32>
    %474 = arith.mulf %171, %473 : vector<8x128xf32>
    %475 = arith.addf %472, %474 : vector<8x128xf32>
    %476 = vector.broadcast %106 : f32 to vector<8x128xf32>
    %477 = arith.mulf %183, %476 : vector<8x128xf32>
    %478 = arith.addf %475, %477 : vector<8x128xf32>
    %479 = vector.broadcast %108 : f32 to vector<8x128xf32>
    %480 = arith.mulf %195, %479 : vector<8x128xf32>
    %481 = arith.addf %478, %480 : vector<8x128xf32>
    %482 = vector.broadcast %103 : f32 to vector<8x128xf32>
    %483 = arith.mulf %165, %482 : vector<8x128xf32>
    %484 = arith.addf %469, %483 : vector<8x128xf32>
    %485 = vector.broadcast %105 : f32 to vector<8x128xf32>
    %486 = arith.mulf %177, %485 : vector<8x128xf32>
    %487 = arith.addf %484, %486 : vector<8x128xf32>
    %488 = vector.broadcast %107 : f32 to vector<8x128xf32>
    %489 = arith.mulf %189, %488 : vector<8x128xf32>
    %490 = arith.addf %487, %489 : vector<8x128xf32>
    %491 = vector.broadcast %109 : f32 to vector<8x128xf32>
    %492 = arith.mulf %201, %491 : vector<8x128xf32>
    %493 = arith.addf %490, %492 : vector<8x128xf32>
    %494 = arith.addf %481, %493 : vector<8x128xf32>
    %495 = vector.broadcast %128 : f32 to vector<8x128xf32>
    %496 = arith.addf %494, %495 : vector<8x128xf32>
    %cst_19 = arith.constant 0.000000e+00 : f32
    %497 = vector.broadcast %cst_19 : f32 to vector<8x128xf32>
    %498 = arith.maximumf %496, %497 : vector<8x128xf32>
    %499 = vector.broadcast %110 : f32 to vector<8x128xf32>
    %500 = arith.mulf %147, %499 : vector<8x128xf32>
    %501 = vector.broadcast %111 : f32 to vector<8x128xf32>
    %502 = arith.mulf %153, %501 : vector<8x128xf32>
    %503 = vector.broadcast %112 : f32 to vector<8x128xf32>
    %504 = arith.mulf %159, %503 : vector<8x128xf32>
    %505 = arith.addf %500, %504 : vector<8x128xf32>
    %506 = vector.broadcast %114 : f32 to vector<8x128xf32>
    %507 = arith.mulf %171, %506 : vector<8x128xf32>
    %508 = arith.addf %505, %507 : vector<8x128xf32>
    %509 = vector.broadcast %116 : f32 to vector<8x128xf32>
    %510 = arith.mulf %183, %509 : vector<8x128xf32>
    %511 = arith.addf %508, %510 : vector<8x128xf32>
    %512 = vector.broadcast %118 : f32 to vector<8x128xf32>
    %513 = arith.mulf %195, %512 : vector<8x128xf32>
    %514 = arith.addf %511, %513 : vector<8x128xf32>
    %515 = vector.broadcast %113 : f32 to vector<8x128xf32>
    %516 = arith.mulf %165, %515 : vector<8x128xf32>
    %517 = arith.addf %502, %516 : vector<8x128xf32>
    %518 = vector.broadcast %115 : f32 to vector<8x128xf32>
    %519 = arith.mulf %177, %518 : vector<8x128xf32>
    %520 = arith.addf %517, %519 : vector<8x128xf32>
    %521 = vector.broadcast %117 : f32 to vector<8x128xf32>
    %522 = arith.mulf %189, %521 : vector<8x128xf32>
    %523 = arith.addf %520, %522 : vector<8x128xf32>
    %524 = vector.broadcast %119 : f32 to vector<8x128xf32>
    %525 = arith.mulf %201, %524 : vector<8x128xf32>
    %526 = arith.addf %523, %525 : vector<8x128xf32>
    %527 = arith.addf %514, %526 : vector<8x128xf32>
    %528 = vector.broadcast %129 : f32 to vector<8x128xf32>
    %529 = arith.addf %527, %528 : vector<8x128xf32>
    %cst_20 = arith.constant 0.000000e+00 : f32
    %530 = vector.broadcast %cst_20 : f32 to vector<8x128xf32>
    %531 = arith.maximumf %529, %530 : vector<8x128xf32>
    %532 = vector.broadcast %130 : f32 to vector<8x128xf32>
    %533 = arith.mulf %234, %532 : vector<8x128xf32>
    %534 = vector.broadcast %131 : f32 to vector<8x128xf32>
    %535 = arith.mulf %267, %534 : vector<8x128xf32>
    %536 = vector.broadcast %132 : f32 to vector<8x128xf32>
    %537 = arith.mulf %300, %536 : vector<8x128xf32>
    %538 = arith.addf %533, %537 : vector<8x128xf32>
    %539 = vector.broadcast %134 : f32 to vector<8x128xf32>
    %540 = arith.mulf %366, %539 : vector<8x128xf32>
    %541 = arith.addf %538, %540 : vector<8x128xf32>
    %542 = vector.broadcast %136 : f32 to vector<8x128xf32>
    %543 = arith.mulf %432, %542 : vector<8x128xf32>
    %544 = arith.addf %541, %543 : vector<8x128xf32>
    %545 = vector.broadcast %138 : f32 to vector<8x128xf32>
    %546 = arith.mulf %498, %545 : vector<8x128xf32>
    %547 = arith.addf %544, %546 : vector<8x128xf32>
    %548 = vector.broadcast %133 : f32 to vector<8x128xf32>
    %549 = arith.mulf %333, %548 : vector<8x128xf32>
    %550 = arith.addf %535, %549 : vector<8x128xf32>
    %551 = vector.broadcast %135 : f32 to vector<8x128xf32>
    %552 = arith.mulf %399, %551 : vector<8x128xf32>
    %553 = arith.addf %550, %552 : vector<8x128xf32>
    %554 = vector.broadcast %137 : f32 to vector<8x128xf32>
    %555 = arith.mulf %465, %554 : vector<8x128xf32>
    %556 = arith.addf %553, %555 : vector<8x128xf32>
    %557 = vector.broadcast %139 : f32 to vector<8x128xf32>
    %558 = arith.mulf %531, %557 : vector<8x128xf32>
    %559 = arith.addf %556, %558 : vector<8x128xf32>
    %560 = arith.addf %547, %559 : vector<8x128xf32>
    %561 = vector.broadcast %140 : f32 to vector<8x128xf32>
    %562 = arith.addf %560, %561 : vector<8x128xf32>
    %c0_21 = arith.constant 0 : index
    %c0_22 = arith.constant 0 : index
    %563 = vector.load %arg3[%c0_21, %c0_22] : memref<8x128xf32, #tpu.memory_space<vmem>>, vector<8x128xf32>
    tpu.vector_store %arg3[%c0_21, %c0_22], %562 {strides = array<i32>} : memref<8x128xf32, #tpu.memory_space<vmem>>, vector<8x128xf32>,
    return
  }
  func.func @transform_0(%arg0: i32) -> i32 {
    %c0_i32 = arith.constant 0 : i32
    %c0_i32_0 = arith.constant 0 : i32
    return %c0_i32 : i32
  }
  func.func @transform_1(%arg0: i32) -> (i32, i32) {
    %c0_i32 = arith.constant 0 : i32
    %c0_i32_0 = arith.constant 0 : i32
    return %arg0, %c0_i32 : i32, i32
  }
  func.func @transform_2(%arg0: i32) -> (i32, i32) {
    %c0_i32 = arith.constant 0 : i32
    %c0_i32_0 = arith.constant 0 : i32
    return %arg0, %c0_i32 : i32, i32
  }
}

</mosaic_0001>

<llo_original>
// kernel: tpu_custom_call.1
$region0: #{tpu_custom_call.1}
  #allocation0 [shape = 'u32[]', space=smem, size = 0x4, offset = 0x4, fixed_abs, tag = 'smem constant byte address 0x4 - core index']
  #allocation1 [shape = 'u32[144,128]{1,0:T(1,128)}', space=vmem, size = 0x12000, scoped, tag = 'internal scratch']
  %s0 = inlined_call_operand.hbm [shape: f32[141], index: 0, kind: input, shape index: {}]
  %s1 = inlined_call_operand.hbm [shape: f32[8,128], index: 1, kind: input, shape index: {}]
  %s2 = inlined_call_operand.hbm [shape: f32[8,128], index: 2, kind: output, shape index: {}]
  %s3 = sld [smem:[#allocation0]]
  $region26: #{tpu_custom_call.1} parent=0
    _
  %s5 = ssub.s32 1, %s3
  %s6 = scalar_select 0, %s5, %s3
  $region1: #{tpu_custom_call.1} parent=0
    #allocation2 [shape = 'u8[1024]{0}', space=smem, size = 0x400, scoped, tag = 'input window, operand 0, single buffered']
    #allocation3 [shape = 's32[1]{0}', space=sflag, size = 0x4, scoped, tag = 'scoped memory for tpu_custom_call.1']
    #allocation4 [shape = 's32[1]{0}', space=sflag, size = 0x4, scoped, tag = 'scoped memory for tpu_custom_call.1']
    #allocation5 [shape = 's32[1]{0}', space=sflag, size = 0x4, scoped, tag = 'scoped memory for tpu_custom_call.1']
    #allocation6 [shape = 'u8[4096]{0}', space=vmem, size = 0x1000, scoped, tag = 'input window, operand 1, single buffered']
    #allocation7 [shape = 'u8[4096]{0}', space=vmem, size = 0x1000, scoped, tag = 'output window, operand 0, single buffered']
    %7 = vsyncpa [#allocation5], 0
    %8 = vsyncpa [#allocation3], 0
    %9 = vsyncpa [#allocation4], 0
    // Predicated region
    $region2: #{tpu_custom_call.1} parent=1 // pred_check
      _
    $region3: #{tpu_custom_call.1} parent=1 // pred_check_branch
      %11 = sbr.rel (0) target = $region5
    $region4: #{tpu_custom_call.1} parent=1 // pred_region
      %s13 = ssub.s32 32, 32
      %14 = vsyncadd [#allocation5], %s13
      %17 = dma.hbm_to_smem %s0, 32, [#allocation2], [#allocation5]
    $region5: #{tpu_custom_call.1} parent=1 // pred_fallthru
      _
    // Predicated region
    $region6: #{tpu_custom_call.1} parent=1 // pred_check
      _
    $region7: #{tpu_custom_call.1} parent=1 // pred_check_branch
      %19 = sbr.rel (0) target = $region9
    $region8: #{tpu_custom_call.1} parent=1 // pred_region
      %s21 = ssub.s32 128, 128
      %22 = vsyncadd [#allocation3], %s21
      %s24 = sshll.u32 [#allocation6], 4
      %s25 = int_to_ptr.vmem [resolvable:$true] %s24
      %27 = dma.hbm_to_vmem [thread:$0]  %s1, 128, %s25, [#allocation3]
    $region9: #{tpu_custom_call.1} parent=1 // pred_fallthru
      _
    // Predicated region
    $region10: #{tpu_custom_call.1} parent=1 // pred_check
      _
    $region11: #{tpu_custom_call.1} parent=1 // pred_check_branch
      %29 = sbr.rel (0) target = $region13
    $region12: #{tpu_custom_call.1} parent=1 // pred_region
      %30 = dma.done [#allocation5], 32
    $region13: #{tpu_custom_call.1} parent=1 // pred_fallthru
      _
    // Predicated region
    $region14: #{tpu_custom_call.1} parent=1 // pred_check
      _
    $region15: #{tpu_custom_call.1} parent=1 // pred_check_branch
      %32 = sbr.rel (0) target = $region17
    $region16: #{tpu_custom_call.1} parent=1 // pred_region
      %33 = dma.done [#allocation3], 128
    $region17: #{tpu_custom_call.1} parent=1 // pred_fallthru
      _
    %34 = sfence
    %s35 = sld [smem:[#allocation2]]
    %s36 = sld [smem:[#allocation2 + $0x1]]
    %s37 = sld [smem:[#allocation2 + $0x2]]
    %s38 = sld [smem:[#allocation2 + $0x3]]
    %s39 = sld [smem:[#allocation2 + $0x4]]
    %s40 = sld [smem:[#allocation2 + $0x5]]
    %s41 = sld [smem:[#allocation2 + $0x6]]
    %s42 = sld [smem:[#allocation2 + $0x7]]
    %s43 = sld [smem:[#allocation2 + $0x8]]
    %s44 = sld [smem:[#allocation2 + $0x9]]
    %s45 = sld [smem:[#allocation2 + $0xa]]
    %s46 = sld [smem:[#allocation2 + $0xb]]
    %s47 = sld [smem:[#allocation2 + $0xc]]
    %s48 = sld [smem:[#allocation2 + $0xd]]
    %s49 = sld [smem:[#allocation2 + $0xe]]
    %s50 = sld [smem:[#allocation2 + $0xf]]
    %s51 = sld [smem:[#allocation2 + $0x10]]
    %s52 = sld [smem:[#allocation2 + $0x11]]
    %s53 = sld [smem:[#allocation2 + $0x12]]
    %s54 = sld [smem:[#allocation2 + $0x13]]
    %s55 = sld [smem:[#allocation2 + $0x14]]
    %s56 = sld [smem:[#allocation2 + $0x15]]
    %s57 = sld [smem:[#allocation2 + $0x16]]
    %s58 = sld [smem:[#allocation2 + $0x17]]
    %s59 = sld [smem:[#allocation2 + $0x18]]
    %s60 = sld [smem:[#allocation2 + $0x19]]
    %s61 = sld [smem:[#allocation2 + $0x1a]]
    %s62 = sld [smem:[#allocation2 + $0x1b]]
    %s63 = sld [smem:[#allocation2 + $0x1c]]
    %s64 = sld [smem:[#allocation2 + $0x1d]]
    %s65 = sld [smem:[#allocation2 + $0x1e]]
    %s66 = sld [smem:[#allocation2 + $0x1f]]
    %s67 = sld [smem:[#allocation2 + $0x20]]
    %s68 = sld [smem:[#allocation2 + $0x21]]
    %s69 = sld [smem:[#allocation2 + $0x22]]
    %s70 = sld [smem:[#allocation2 + $0x23]]
    %s71 = sld [smem:[#allocation2 + $0x24]]
    %s72 = sld [smem:[#allocation2 + $0x25]]
    %s73 = sld [smem:[#allocation2 + $0x26]]
    %s74 = sld [smem:[#allocation2 + $0x27]]
    %s75 = sld [smem:[#allocation2 + $0x28]]
    %s76 = sld [smem:[#allocation2 + $0x29]]
    %s77 = sld [smem:[#allocation2 + $0x2a]]
    %s78 = sld [smem:[#allocation2 + $0x2b]]
    %s79 = sld [smem:[#allocation2 + $0x2c]]
    %s80 = sld [smem:[#allocation2 + $0x2d]]
    %s81 = sld [smem:[#allocation2 + $0x2e]]
    %s82 = sld [smem:[#allocation2 + $0x2f]]
    %s83 = sld [smem:[#allocation2 + $0x30]]
    %s84 = sld [smem:[#allocation2 + $0x31]]
    %s85 = sld [smem:[#allocation2 + $0x32]]
    %s86 = sld [smem:[#allocation2 + $0x33]]
    %s87 = sld [smem:[#allocation2 + $0x34]]
    %s88 = sld [smem:[#allocation2 + $0x35]]
    %s89 = sld [smem:[#allocation2 + $0x36]]
    %s90 = sld [smem:[#allocation2 + $0x37]]
    %s91 = sld [smem:[#allocation2 + $0x38]]
    %s92 = sld [smem:[#allocation2 + $0x39]]
    %s93 = sld [smem:[#allocation2 + $0x3a]]
    %s94 = sld [smem:[#allocation2 + $0x3b]]
    %s95 = sld [smem:[#allocation2 + $0x3c]]
    %s96 = sld [smem:[#allocation2 + $0x3d]]
    %s97 = sld [smem:[#allocation2 + $0x3e]]
    %s98 = sld [smem:[#allocation2 + $0x3f]]
    %s99 = sld [smem:[#allocation2 + $0x40]]
    %s100 = sld [smem:[#allocation2 + $0x41]]
    %s101 = sld [smem:[#allocation2 + $0x42]]
    %s102 = sld [smem:[#allocation2 + $0x43]]
    %s103 = sld [smem:[#allocation2 + $0x44]]
    %s104 = sld [smem:[#allocation2 + $0x45]]
    %s105 = sld [smem:[#allocation2 + $0x46]]
    %s106 = sld [smem:[#allocation2 + $0x47]]
    %s107 = sld [smem:[#allocation2 + $0x48]]
    %s108 = sld [smem:[#allocation2 + $0x49]]
    %s109 = sld [smem:[#allocation2 + $0x4a]]
    %s110 = sld [smem:[#allocation2 + $0x4b]]
    %s111 = sld [smem:[#allocation2 + $0x4c]]
    %s112 = sld [smem:[#allocation2 + $0x4d]]
    %s113 = sld [smem:[#allocation2 + $0x4e]]
    %s114 = sld [smem:[#allocation2 + $0x4f]]
    %s115 = sld [smem:[#allocation2 + $0x50]]
    %s116 = sld [smem:[#allocation2 + $0x51]]
    %s117 = sld [smem:[#allocation2 + $0x52]]
    %s118 = sld [smem:[#allocation2 + $0x53]]
    %s119 = sld [smem:[#allocation2 + $0x54]]
    %s120 = sld [smem:[#allocation2 + $0x55]]
    %s121 = sld [smem:[#allocation2 + $0x56]]
    %s122 = sld [smem:[#allocation2 + $0x57]]
    %s123 = sld [smem:[#allocation2 + $0x58]]
    %s124 = sld [smem:[#allocation2 + $0x59]]
    %s125 = sld [smem:[#allocation2 + $0x5a]]
    %s126 = sld [smem:[#allocation2 + $0x5b]]
    %s127 = sld [smem:[#allocation2 + $0x5c]]
    %s128 = sld [smem:[#allocation2 + $0x5d]]
    %s129 = sld [smem:[#allocation2 + $0x5e]]
    %s130 = sld [smem:[#allocation2 + $0x5f]]
    %s131 = sld [smem:[#allocation2 + $0x60]]
    %s132 = sld [smem:[#allocation2 + $0x61]]
    %s133 = sld [smem:[#allocation2 + $0x62]]
    %s134 = sld [smem:[#allocation2 + $0x63]]
    %s135 = sld [smem:[#allocation2 + $0x64]]
    %s136 = sld [smem:[#allocation2 + $0x65]]
    %s137 = sld [smem:[#allocation2 + $0x66]]
    %s138 = sld [smem:[#allocation2 + $0x67]]
    %s139 = sld [smem:[#allocation2 + $0x68]]
    %s140 = sld [smem:[#allocation2 + $0x69]]
    %s141 = sld [smem:[#allocation2 + $0x6a]]
    %s142 = sld [smem:[#allocation2 + $0x6b]]
    %s143 = sld [smem:[#allocation2 + $0x6c]]
    %s144 = sld [smem:[#allocation2 + $0x6d]]
    %s145 = sld [smem:[#allocation2 + $0x6e]]
    %s146 = sld [smem:[#allocation2 + $0x6f]]
    %s147 = sld [smem:[#allocation2 + $0x70]]
    %s148 = sld [smem:[#allocation2 + $0x71]]
    %s149 = sld [smem:[#allocation2 + $0x72]]
    %s150 = sld [smem:[#allocation2 + $0x73]]
    %s151 = sld [smem:[#allocation2 + $0x74]]
    %s152 = sld [smem:[#allocation2 + $0x75]]
    %s153 = sld [smem:[#allocation2 + $0x76]]
    %s154 = sld [smem:[#allocation2 + $0x77]]
    %s155 = sld [smem:[#allocation2 + $0x78]]
    %s156 = sld [smem:[#allocation2 + $0x79]]
    %s157 = sld [smem:[#allocation2 + $0x7a]]
    %s158 = sld [smem:[#allocation2 + $0x7b]]
    %s159 = sld [smem:[#allocation2 + $0x7c]]
    %s160 = sld [smem:[#allocation2 + $0x7d]]
    %s161 = sld [smem:[#allocation2 + $0x7e]]
    %s162 = sld [smem:[#allocation2 + $0x7f]]
    %s163 = sld [smem:[#allocation2 + $0x80]]
    %s164 = sld [smem:[#allocation2 + $0x81]]
    %s165 = sld [smem:[#allocation2 + $0x82]]
    %s166 = sld [smem:[#allocation2 + $0x83]]
    %s167 = sld [smem:[#allocation2 + $0x84]]
    %s168 = sld [smem:[#allocation2 + $0x85]]
    %s169 = sld [smem:[#allocation2 + $0x86]]
    %s170 = sld [smem:[#allocation2 + $0x87]]
    %s171 = sld [smem:[#allocation2 + $0x88]]
    %s172 = sld [smem:[#allocation2 + $0x89]]
    %s173 = sld [smem:[#allocation2 + $0x8a]]
    %s174 = sld [smem:[#allocation2 + $0x8b]]
    %s175 = sld [smem:[#allocation2 + $0x8c]]
    %v176 = vld [vmem:[#allocation6] sm:$0xff]
    %v177 = vstv %s35
    %v178 = vmul.f32 %v177, %v176
    %v179 = vstv %s45
    %v180 = vadd.f32 %v178, %v179
    %v181 = vmax.f32 %v180, 0.0
    %v182 = vstv %s36
    %v183 = vmul.f32 %v182, %v176
    %v184 = vstv %s46
    %v185 = vadd.f32 %v183, %v184
    %v186 = vmax.f32 %v185, 0.0
    %v187 = vstv %s37
    %v188 = vmul.f32 %v187, %v176
    %v189 = vstv %s47
    %v190 = vadd.f32 %v188, %v189
    %v191 = vmax.f32 %v190, 0.0
    %v192 = vstv %s38
    %v193 = vmul.f32 %v192, %v176
    %v194 = vstv %s48
    %v195 = vadd.f32 %v193, %v194
    %v196 = vmax.f32 %v195, 0.0
    %v197 = vstv %s39
    %v198 = vmul.f32 %v197, %v176
    %v199 = vstv %s49
    %v200 = vadd.f32 %v198, %v199
    %v201 = vmax.f32 %v200, 0.0
    %v202 = vstv %s40
    %v203 = vmul.f32 %v202, %v176
    %v204 = vstv %s50
    %v205 = vadd.f32 %v203, %v204
    %v206 = vmax.f32 %v205, 0.0
    %v207 = vstv %s41
    %v208 = vmul.f32 %v207, %v176
    %v209 = vstv %s51
    %v210 = vadd.f32 %v208, %v209
    %v211 = vmax.f32 %v210, 0.0
    %v212 = vstv %s42
    %v213 = vmul.f32 %v212, %v176
    %v214 = vstv %s52
    %v215 = vadd.f32 %v213, %v214
    %v216 = vmax.f32 %v215, 0.0
    %v217 = vstv %s43
    %v218 = vmul.f32 %v217, %v176
    %v219 = vstv %s53
    %v220 = vadd.f32 %v218, %v219
    %v221 = vmax.f32 %v220, 0.0
    %v222 = vstv %s44
    %v223 = vmul.f32 %v222, %v176
    %v224 = vstv %s54
    %v225 = vadd.f32 %v223, %v224
    %v226 = vmax.f32 %v225, 0.0
    %v227 = vstv %s55
    %v228 = vmul.f32 %v181, %v227
    %v229 = vstv %s56
    %v230 = vmul.f32 %v186, %v229
    %v231 = vstv %s57
    %v232 = vmul.f32 %v191, %v231
    %v233 = vadd.f32 %v228, %v232
    %v234 = vstv %s59
    %v235 = vmul.f32 %v201, %v234
    %v236 = vadd.f32 %v233, %v235
    %v237 = vstv %s61
    %v238 = vmul.f32 %v211, %v237
    %v239 = vadd.f32 %v236, %v238
    %v240 = vstv %s63
    %v241 = vmul.f32 %v221, %v240
    %v242 = vadd.f32 %v239, %v241
    %v243 = vstv %s58
    %v244 = vmul.f32 %v196, %v243
    %v245 = vadd.f32 %v230, %v244
    %v246 = vstv %s60
    %v247 = vmul.f32 %v206, %v246
    %v248 = vadd.f32 %v245, %v247
    %v249 = vstv %s62
    %v250 = vmul.f32 %v216, %v249
    %v251 = vadd.f32 %v248, %v250
    %v252 = vstv %s64
    %v253 = vmul.f32 %v226, %v252
    %v254 = vadd.f32 %v251, %v253
    %v255 = vadd.f32 %v242, %v254
    %v256 = vstv %s155
    %v257 = vadd.f32 %v255, %v256
    %v258 = vmax.f32 %v257, 0.0
    %v259 = vstv %s65
    %v260 = vmul.f32 %v181, %v259
    %v261 = vstv %s66
    %v262 = vmul.f32 %v186, %v261
    %v263 = vstv %s67
    %v264 = vmul.f32 %v191, %v263
    %v265 = vadd.f32 %v260, %v264
    %v266 = vstv %s69
    %v267 = vmul.f32 %v201, %v266
    %v268 = vadd.f32 %v265, %v267
    %v269 = vstv %s71
    %v270 = vmul.f32 %v211, %v269
    %v271 = vadd.f32 %v268, %v270
    %v272 = vstv %s73
    %v273 = vmul.f32 %v221, %v272
    %v274 = vadd.f32 %v271, %v273
    %v275 = vstv %s68
    %v276 = vmul.f32 %v196, %v275
    %v277 = vadd.f32 %v262, %v276
    %v278 = vstv %s70
    %v279 = vmul.f32 %v206, %v278
    %v280 = vadd.f32 %v277, %v279
    %v281 = vstv %s72
    %v282 = vmul.f32 %v216, %v281
    %v283 = vadd.f32 %v280, %v282
    %v284 = vstv %s74
    %v285 = vmul.f32 %v226, %v284
    %v286 = vadd.f32 %v283, %v285
    %v287 = vadd.f32 %v274, %v286
    %v288 = vstv %s156
    %v289 = vadd.f32 %v287, %v288
    %v290 = vmax.f32 %v289, 0.0
    %v291 = vstv %s75
    %v292 = vmul.f32 %v181, %v291
    %v293 = vstv %s76
    %v294 = vmul.f32 %v186, %v293
    %v295 = vstv %s77
    %v296 = vmul.f32 %v191, %v295
    %v297 = vadd.f32 %v292, %v296
    %v298 = vstv %s79
    %v299 = vmul.f32 %v201, %v298
    %v300 = vadd.f32 %v297, %v299
    %v301 = vstv %s81
    %v302 = vmul.f32 %v211, %v301
    %v303 = vadd.f32 %v300, %v302
    %v304 = vstv %s83
    %v305 = vmul.f32 %v221, %v304
    %v306 = vadd.f32 %v303, %v305
    %v307 = vstv %s78
    %v308 = vmul.f32 %v196, %v307
    %v309 = vadd.f32 %v294, %v308
    %v310 = vstv %s80
    %v311 = vmul.f32 %v206, %v310
    %v312 = vadd.f32 %v309, %v311
    %v313 = vstv %s82
    %v314 = vmul.f32 %v216, %v313
    %v315 = vadd.f32 %v312, %v314
    %v316 = vstv %s84
    %v317 = vmul.f32 %v226, %v316
    %v318 = vadd.f32 %v315, %v317
    %v319 = vadd.f32 %v306, %v318
    %v320 = vstv %s157
    %v321 = vadd.f32 %v319, %v320
    %v322 = vmax.f32 %v321, 0.0
    %v323 = vstv %s85
    %v324 = vmul.f32 %v181, %v323
    %v325 = vstv %s86
    %v326 = vmul.f32 %v186, %v325
    %v327 = vstv %s87
    %v328 = vmul.f32 %v191, %v327
    %v329 = vadd.f32 %v324, %v328
    %v330 = vstv %s89
    %v331 = vmul.f32 %v201, %v330
    %v332 = vadd.f32 %v329, %v331
    %v333 = vstv %s91
    %v334 = vmul.f32 %v211, %v333
    %v335 = vadd.f32 %v332, %v334
    %v336 = vstv %s93
    %v337 = vmul.f32 %v221, %v336
    %v338 = vadd.f32 %v335, %v337
    %v339 = vstv %s88
    %v340 = vmul.f32 %v196, %v339
    %v341 = vadd.f32 %v326, %v340
    %v342 = vstv %s90
    %v343 = vmul.f32 %v206, %v342
    %v344 = vadd.f32 %v341, %v343
    %v345 = vstv %s92
    %v346 = vmul.f32 %v216, %v345
    %v347 = vadd.f32 %v344, %v346
    %v348 = vstv %s94
    %v349 = vmul.f32 %v226, %v348
    %v350 = vadd.f32 %v347, %v349
    %v351 = vadd.f32 %v338, %v350
    %v352 = vstv %s158
    %v353 = vadd.f32 %v351, %v352
    %v354 = vmax.f32 %v353, 0.0
    %v355 = vstv %s95
    %v356 = vmul.f32 %v181, %v355
    %v357 = vstv %s96
    %v358 = vmul.f32 %v186, %v357
    %v359 = vstv %s97
    %v360 = vmul.f32 %v191, %v359
    %v361 = vadd.f32 %v356, %v360
    %v362 = vstv %s99
    %v363 = vmul.f32 %v201, %v362
    %v364 = vadd.f32 %v361, %v363
    %v365 = vstv %s101
    %v366 = vmul.f32 %v211, %v365
    %v367 = vadd.f32 %v364, %v366
    %v368 = vstv %s103
    %v369 = vmul.f32 %v221, %v368
    %v370 = vadd.f32 %v367, %v369
    %v371 = vstv %s98
    %v372 = vmul.f32 %v196, %v371
    %v373 = vadd.f32 %v358, %v372
    %v374 = vstv %s100
    %v375 = vmul.f32 %v206, %v374
    %v376 = vadd.f32 %v373, %v375
    %v377 = vstv %s102
    %v378 = vmul.f32 %v216, %v377
    %v379 = vadd.f32 %v376, %v378
    %v380 = vstv %s104
    %v381 = vmul.f32 %v226, %v380
    %v382 = vadd.f32 %v379, %v381
    %v383 = vadd.f32 %v370, %v382
    %v384 = vstv %s159
    %v385 = vadd.f32 %v383, %v384
    %v386 = vmax.f32 %v385, 0.0
    %v387 = vstv %s105
    %v388 = vmul.f32 %v181, %v387
    %v389 = vstv %s106
    %v390 = vmul.f32 %v186, %v389
    %v391 = vstv %s107
    %v392 = vmul.f32 %v191, %v391
    %v393 = vadd.f32 %v388, %v392
    %v394 = vstv %s109
    %v395 = vmul.f32 %v201, %v394
    %v396 = vadd.f32 %v393, %v395
    %v397 = vstv %s111
    %v398 = vmul.f32 %v211, %v397
    %v399 = vadd.f32 %v396, %v398
    %v400 = vstv %s113
    %v401 = vmul.f32 %v221, %v400
    %v402 = vadd.f32 %v399, %v401
    %v403 = vstv %s108
    %v404 = vmul.f32 %v196, %v403
    %v405 = vadd.f32 %v390, %v404
    %v406 = vstv %s110
    %v407 = vmul.f32 %v206, %v406
    %v408 = vadd.f32 %v405, %v407
    %v409 = vstv %s112
    %v410 = vmul.f32 %v216, %v409
    %v411 = vadd.f32 %v408, %v410
    %v412 = vstv %s114
    %v413 = vmul.f32 %v226, %v412
    %v414 = vadd.f32 %v411, %v413
    %v415 = vadd.f32 %v402, %v414
    %v416 = vstv %s160
    %v417 = vadd.f32 %v415, %v416
    %v418 = vmax.f32 %v417, 0.0
    %v419 = vstv %s115
    %v420 = vmul.f32 %v181, %v419
    %v421 = vstv %s116
    %v422 = vmul.f32 %v186, %v421
    %v423 = vstv %s117
    %v424 = vmul.f32 %v191, %v423
    %v425 = vadd.f32 %v420, %v424
    %v426 = vstv %s119
    %v427 = vmul.f32 %v201, %v426
    %v428 = vadd.f32 %v425, %v427
    %v429 = vstv %s121
    %v430 = vmul.f32 %v211, %v429
    %v431 = vadd.f32 %v428, %v430
    %v432 = vstv %s123
    %v433 = vmul.f32 %v221, %v432
    %v434 = vadd.f32 %v431, %v433
    %v435 = vstv %s118
    %v436 = vmul.f32 %v196, %v435
    %v437 = vadd.f32 %v422, %v436
    %v438 = vstv %s120
    %v439 = vmul.f32 %v206, %v438
    %v440 = vadd.f32 %v437, %v439
    %v441 = vstv %s122
    %v442 = vmul.f32 %v216, %v441
    %v443 = vadd.f32 %v440, %v442
    %v444 = vstv %s124
    %v445 = vmul.f32 %v226, %v444
    %v446 = vadd.f32 %v443, %v445
    %v447 = vadd.f32 %v434, %v446
    %v448 = vstv %s161
    %v449 = vadd.f32 %v447, %v448
    %v450 = vmax.f32 %v449, 0.0
    %v451 = vstv %s125
    %v452 = vmul.f32 %v181, %v451
    %v453 = vstv %s126
    %v454 = vmul.f32 %v186, %v453
    %v455 = vstv %s127
    %v456 = vmul.f32 %v191, %v455
    %v457 = vadd.f32 %v452, %v456
    %v458 = vstv %s129
    %v459 = vmul.f32 %v201, %v458
    %v460 = vadd.f32 %v457, %v459
    %v461 = vstv %s131
    %v462 = vmul.f32 %v211, %v461
    %v463 = vadd.f32 %v460, %v462
    %v464 = vstv %s133
    %v465 = vmul.f32 %v221, %v464
    %v466 = vadd.f32 %v463, %v465
    %v467 = vstv %s128
    %v468 = vmul.f32 %v196, %v467
    %v469 = vadd.f32 %v454, %v468
    %v470 = vstv %s130
    %v471 = vmul.f32 %v206, %v470
    %v472 = vadd.f32 %v469, %v471
    %v473 = vstv %s132
    %v474 = vmul.f32 %v216, %v473
    %v475 = vadd.f32 %v472, %v474
    %v476 = vstv %s134
    %v477 = vmul.f32 %v226, %v476
    %v478 = vadd.f32 %v475, %v477
    %v479 = vadd.f32 %v466, %v478
    %v480 = vstv %s162
    %v481 = vadd.f32 %v479, %v480
    %v482 = vmax.f32 %v481, 0.0
    %v483 = vstv %s135
    %v484 = vmul.f32 %v181, %v483
    %v485 = vstv %s136
    %v486 = vmul.f32 %v186, %v485
    %v487 = vstv %s137
    %v488 = vmul.f32 %v191, %v487
    %v489 = vadd.f32 %v484, %v488
    %v490 = vstv %s139
    %v491 = vmul.f32 %v201, %v490
    %v492 = vadd.f32 %v489, %v491
    %v493 = vstv %s141
    %v494 = vmul.f32 %v211, %v493
    %v495 = vadd.f32 %v492, %v494
    %v496 = vstv %s143
    %v497 = vmul.f32 %v221, %v496
    %v498 = vadd.f32 %v495, %v497
    %v499 = vstv %s138
    %v500 = vmul.f32 %v196, %v499
    %v501 = vadd.f32 %v486, %v500
    %v502 = vstv %s140
    %v503 = vmul.f32 %v206, %v502
    %v504 = vadd.f32 %v501, %v503
    %v505 = vstv %s142
    %v506 = vmul.f32 %v216, %v505
    %v507 = vadd.f32 %v504, %v506
    %v508 = vstv %s144
    %v509 = vmul.f32 %v226, %v508
    %v510 = vadd.f32 %v507, %v509
    %v511 = vadd.f32 %v498, %v510
    %v512 = vstv %s163
    %v513 = vadd.f32 %v511, %v512
    %v514 = vmax.f32 %v513, 0.0
    %v515 = vstv %s145
    %v516 = vmul.f32 %v181, %v515
    %v517 = vstv %s146
    %v518 = vmul.f32 %v186, %v517
    %v519 = vstv %s147
    %v520 = vmul.f32 %v191, %v519
    %v521 = vadd.f32 %v516, %v520
    %v522 = vstv %s149
    %v523 = vmul.f32 %v201, %v522
    %v524 = vadd.f32 %v521, %v523
    %v525 = vstv %s151
    %v526 = vmul.f32 %v211, %v525
    %v527 = vadd.f32 %v524, %v526
    %v528 = vstv %s153
    %v529 = vmul.f32 %v221, %v528
    %v530 = vadd.f32 %v527, %v529
    %v531 = vstv %s148
    %v532 = vmul.f32 %v196, %v531
    %v533 = vadd.f32 %v518, %v532
    %v534 = vstv %s150
    %v535 = vmul.f32 %v206, %v534
    %v536 = vadd.f32 %v533, %v535
    %v537 = vstv %s152
    %v538 = vmul.f32 %v216, %v537
    %v539 = vadd.f32 %v536, %v538
    %v540 = vstv %s154
    %v541 = vmul.f32 %v226, %v540
    %v542 = vadd.f32 %v539, %v541
    %v543 = vadd.f32 %v530, %v542
    %v544 = vstv %s164
    %v545 = vadd.f32 %v543, %v544
    %v546 = vmax.f32 %v545, 0.0
    %v547 = vstv %s165
    %v548 = vmul.f32 %v258, %v547
    %v549 = vstv %s166
    %v550 = vmul.f32 %v290, %v549
    %v551 = vstv %s167
    %v552 = vmul.f32 %v322, %v551
    %v553 = vadd.f32 %v548, %v552
    %v554 = vstv %s169
    %v555 = vmul.f32 %v386, %v554
    %v556 = vadd.f32 %v553, %v555
    %v557 = vstv %s171
    %v558 = vmul.f32 %v450, %v557
    %v559 = vadd.f32 %v556, %v558
    %v560 = vstv %s173
    %v561 = vmul.f32 %v514, %v560
    %v562 = vadd.f32 %v559, %v561
    %v563 = vstv %s168
    %v564 = vmul.f32 %v354, %v563
    %v565 = vadd.f32 %v550, %v564
    %v566 = vstv %s170
    %v567 = vmul.f32 %v418, %v566
    %v568 = vadd.f32 %v565, %v567
    %v569 = vstv %s172
    %v570 = vmul.f32 %v482, %v569
    %v571 = vadd.f32 %v568, %v570
    %v572 = vstv %s174
    %v573 = vmul.f32 %v546, %v572
    %v574 = vadd.f32 %v571, %v573
    %v575 = vadd.f32 %v562, %v574
    %v576 = vstv %s175
    %v577 = vadd.f32 %v575, %v576
    %578 = vst [vmem:[#allocation7] sm:$0xff] %v577
    // Predicated region
    $region18: #{tpu_custom_call.1} parent=1 // pred_check
      _
    $region19: #{tpu_custom_call.1} parent=1 // pred_check_branch
      %580 = sbr.rel (0) target = $region21
    $region20: #{tpu_custom_call.1} parent=1 // pred_region
      %s582 = ssub.s32 128, 128
      %583 = vsyncadd [#allocation4], %s582
      %s585 = sshll.u32 [#allocation7], 4
      %s586 = int_to_ptr.vmem [resolvable:$true] %s585
      %588 = dma.vmem_to_hbm [thread:$0]  %s586, 128, %s2, [#allocation4]
    $region21: #{tpu_custom_call.1} parent=1 // pred_fallthru
      _
    // Predicated region
    $region22: #{tpu_custom_call.1} parent=1 // pred_check
      _
    $region23: #{tpu_custom_call.1} parent=1 // pred_check_branch
      %590 = sbr.rel (0) target = $region25
    $region24: #{tpu_custom_call.1} parent=1 // pred_region
      %591 = dma.done [#allocation4], 128
    $region25: #{tpu_custom_call.1} parent=1 // pred_fallthru
      _
    %592 = vsyncpa [#allocation3], 1
    %593 = vsyncpa [#allocation4], 1
    %594 = vsyncpa [#allocation5], 1

</llo_original>
